<compile_context>
chip_gen: v6e
topology: v6e:2x2x1
jax: 0.10.0
libtpu: 0.0.40
codegen_flags: <defaults>
</compile_context>

<pallas_src>
import functools

import jax
import jax.numpy as jnp
from jax.experimental import pallas as pl
from jax.experimental.pallas import tpu as pltpu


# ---------------------------------------------------------------------------
# Smoothness (Pallas)
# ---------------------------------------------------------------------------

def _make_smoothness_weights(kernel: int):
    """-1 everywhere, center = kernel*kernel - 1 (matches the PyTorch module)."""
    w = -jnp.ones((kernel, kernel), dtype=jnp.float32)
    w = w.at[kernel // 2, kernel // 2].set(float(kernel * kernel - 1))
    return w


def _smoothness_kernel(*refs, h, w, ksize, has_mask):
    """One block of packed field-images per grid step.

    refs = (x_ref, [mask_ref,] out_ref, pad_scratch)
      x_ref:      (B, H, W)      f32   -- B images (u and v fields of the batch)
      mask_ref:   (B, H, W)      f32   -- optional spatial margin mask
      out_ref:    (1, 8, 128)    f32   -- lane-dense per-block partial sum
      pad_scratch:(B, H+2, W+2)  f32   -- zero-bordered copy (padding fused in-kernel)
    """
    if has_mask:
        x_ref, m_ref, out_ref, pad_ref = refs
    else:
        x_ref, out_ref, pad_ref = refs
        m_ref = None

    x = x_ref[...]                                   # (B, H, W)

    # Zero border handled in VMEM (no HBM padded copies of the inputs).
    pad_ref[...] = jnp.zeros_like(pad_ref)
    pad_ref[:, 1:h + 1, 1:w + 1] = x

    # Separable 3x3 box sum: horizontal 3-tap, then vertical 3-tap.
    hsum = (pad_ref[:, :, 0:w]
            + pad_ref[:, :, 1:w + 1]
            + pad_ref[:, :, 2:w + 2])                # (B, H+2, W)
    box = (hsum[:, 0:h, :]
           + hsum[:, 1:h + 1, :]
           + hsum[:, 2:h + 2, :])                    # (B, H, W)

    # Laplacian-style kernel: conv = k^2 * x_center - boxsum(x).
    conv = float(ksize * ksize) * x - box
    sq = conv * conv
    if has_mask:
        sq = sq * m_ref[...]                         # spatial mask applied once

    # Single in-block reduce; one unmasked lane-dense (8,128) store per block.
    out_ref[...] = jnp.zeros_like(out_ref) + jnp.sum(sq)


def _pick_images_per_block(t, h, w, has_mask, target_bytes=8 * 1024 * 1024):
    """Biggest block that fits a per-step VMEM budget (double-buffered inputs)."""
    per_img = 4 * h * w * 2                          # input tile, x2 pipeline buffers
    if has_mask:
        per_img += 4 * h * w * 2                     # mask tile, x2 pipeline buffers
    per_img += 4 * (h + 2) * (w + 2)                 # padded VMEM scratch
    return max(1, min(t, target_bytes // max(per_img, 1)))


def _smoothness_images(imgs, mask_imgs=None, kernel=3):
    """imgs: (T, H, W) packed single-channel field images; returns scalar f32 sum."""
    # padding=1 in the PyTorch module => only k=3 keeps the 'same'-size output.
    assert kernel == 3, "Smoothness Pallas kernel supports kernel=3 (padding=1) only"
    imgs = imgs.astype(jnp.float32)
    t, h, w = imgs.shape
    has_mask = mask_imgs is not None

    imgs_per_block = _pick_images_per_block(t, h, w, has_mask)
    g = pl.cdiv(t, imgs_per_block)
    t_pad = g * imgs_per_block
    if t_pad != t:
        # Zero images contribute exactly zero loss.
        cfg = ((0, t_pad - t), (0, 0), (0, 0))
        imgs = jnp.pad(imgs, cfg)
        if has_mask:
            mask_imgs = jnp.pad(mask_imgs.astype(jnp.float32), cfg)
    # TODO(synk): for single images larger than the VMEM budget (e.g. 2048^2 on v7x)
    #             add H-tiling with a 2-row halo; not needed at these sizes.

    kern = functools.partial(_smoothness_kernel, h=h, w=w, ksize=kernel,
                             has_mask=has_mask)
    in_specs = [pl.BlockSpec((imgs_per_block, h, w), lambda gi: (gi, 0, 0))]
    inputs = [imgs]
    if has_mask:
        in_specs.append(pl.BlockSpec((imgs_per_block, h, w), lambda gi: (gi, 0, 0)))
        inputs.append(mask_imgs.astype(jnp.float32))

    partials = pl.pallas_call(
        kern,
        out_shape=jax.ShapeDtypeStruct((g, 8, 128), jnp.float32),
        grid_spec=pltpu.PrefetchScalarGridSpec(
            num_scalar_prefetch=0,
            grid=(g,),
            in_specs=in_specs,
            out_specs=pl.BlockSpec((1, 8, 128), lambda gi: (gi, 0, 0)),
            scratch_shapes=[pltpu.VMEM((imgs_per_block, h + 2, w + 2), jnp.float32)],
        ),
        compiler_params=pltpu.CompilerParams(
            dimension_semantics=("parallel",),        # independent blocks -> megacore
            vmem_limit_bytes=32 * 1024 * 1024,
        ),
    )(*inputs)
    return jnp.sum(partials[:, 0, 0])


def _prepare_mask(margin_mask, n, h, w, order):
    """Returns (per-image spatial mask or None, scalar scale or None)."""
    if margin_mask is None:
        return None, None
    if isinstance(margin_mask, (int, float)):
        s = float(margin_mask)
        return None, (None if s == 1.0 else s)
    m = jnp.asarray(margin_mask, jnp.float32)
    if m.ndim == 0:
        return None, m
    if m.ndim == 4:                                   # (N, 1, H, W)
        m = m[:, 0]
    if m.ndim == 2:                                   # (H, W)
        m = jnp.broadcast_to(m, (n, h, w))
    assert m.shape == (n, h, w), f"unsupported margin_mask shape {margin_mask.shape}"
    if order == "interleaved":                        # packing (N,2,H,W) -> (2N,H,W)
        return jnp.repeat(m, 2, axis=0), None
    return jnp.concatenate([m, m], axis=0), None      # packing [u_0..u_N, v_0..v_N]


def smoothness_loss_from_flow(flow, margin_mask=1.0, kernel=3):
    """Smoothness of a (N, 2, H, W) flow tensor (u = ch0, v = ch1). No HBM copies."""
    n, c, h, w = flow.shape
    assert c == 2
    imgs = flow.astype(jnp.float32).reshape(n * 2, h, w)      # free reshape
    mask_imgs, scale = _prepare_mask(margin_mask, n, h, w, order="interleaved")
    total = _smoothness_images(imgs, mask_imgs, kernel)
    return total if scale is None else total * scale


def smoothness_loss(u, v, margin_mask=1.0, kernel=3):
    """Same API as the PyTorch Smoothness module: u, v are (N, 1, H, W)."""
    assert u.shape == v.shape and u.shape[1] == 1
    n, _, h, w = u.shape
    imgs = jnp.concatenate([u[:, 0], v[:, 0]], axis=0).astype(jnp.float32)  # (2N,H,W)
    mask_imgs, scale = _prepare_mask(margin_mask, n, h, w, order="stacked")
    total = _smoothness_images(imgs, mask_imgs, kernel)
    return total if scale is None else total * scale


def _reference_smoothness(u, v, margin_mask=1.0, kernel=3):
    """Pure-JAX reference (lax.conv) matching F.conv2d(..., padding=1)."""
    w = _make_smoothness_weights(kernel).reshape(1, 1, kernel, kernel)
    conv = lambda x: jax.lax.conv_general_dilated(
        x.astype(jnp.float32), w, window_strides=(1, 1),
        padding=((1, 1), (1, 1)), dimension_numbers=("NCHW", "OIHW", "NCHW"))
    return jnp.sum(conv(u) ** 2 * margin_mask + conv(v) ** 2 * margin_mask)


# ---------------------------------------------------------------------------
# Robust squared-difference reduction (Pallas): PhotoMetric penalty and flow MSE
# ---------------------------------------------------------------------------

def _pow_sum_kernel(a_ref, b_ref, out_ref, *, delta2, alpha):
    d = a_ref[...] - b_ref[...]
    base = d * d + delta2
    if alpha == 1.0:
        val = base                                    # plain MSE path
    else:
        val = jnp.exp(alpha * jnp.log(base))          # base > 0 since delta2 > 0
    out_ref[...] = jnp.zeros_like(out_ref) + jnp.sum(val)


def robust_sq_diff_sum(a, b, delta2=0.0, alpha=1.0):
    """sum(((a - b)^2 + delta2)^alpha) over all elements, via a Pallas reduce."""
    assert a.shape == b.shape
    a2 = a.astype(jnp.float32).reshape(-1, a.shape[-1])
    b2 = b.astype(jnp.float32).reshape(-1, b.shape[-1])
    r, c = a2.shape

    max_rows = max(8, (4 * 1024 * 1024) // (4 * c))
    rows_blk = r if r <= max_rows else (max_rows // 8) * 8
    g = pl.cdiv(r, rows_blk)
    rp = g * rows_blk
    if rp != r:
        a2 = jnp.pad(a2, ((0, rp - r), (0, 0)))
        b2 = jnp.pad(b2, ((0, rp - r), (0, 0)))

    kern = functools.partial(_pow_sum_kernel, delta2=float(delta2), alpha=float(alpha))
    partials = pl.pallas_call(
        kern,
        out_shape=jax.ShapeDtypeStruct((g, 8, 128), jnp.float32),
        grid_spec=pltpu.PrefetchScalarGridSpec(
            num_scalar_prefetch=0,
            grid=(g,),
            in_specs=[pl.BlockSpec((rows_blk, c), lambda i: (i, 0)),
                      pl.BlockSpec((rows_blk, c), lambda i: (i, 0))],
            out_specs=pl.BlockSpec((1, 8, 128), lambda i: (i, 0, 0)),
        ),
        compiler_params=pltpu.CompilerParams(
            dimension_semantics=("parallel",),
            vmem_limit_bytes=32 * 1024 * 1024,
        ),
    )(a2, b2)
    total = jnp.sum(partials[:, 0, 0])
    if rp != r:
        # Padded (zero, zero) rows each contributed delta2**alpha per element.
        total = total - (rp - r) * c * (float(delta2) ** float(alpha))
    return total


# ---------------------------------------------------------------------------
# PhotoMetric / warp (plain-JAX gather) and the DeepSupervise composition
# ---------------------------------------------------------------------------

def warp_images_with_flow(image, flow):
    """grid_sample(bilinear, padding_mode='border', align_corners=True) warp.

    image: (N, C, H, W); flow: (N, 2, H, W).
    """
    # TODO(synk): the data-dependent bilinear gather has no clean Pallas equivalent
    #             (would need per-pixel DMA gathers); kept in plain JAX/XLA.
    n, c, hh, ww = image.shape
    h, w = flow.shape[2], flow.shape[3]
    flow_x, flow_y = flow[:, 0], flow[:, 1]                        # (N, H, W)
    coord_x = jnp.arange(w, dtype=jnp.float32)[None, None, :]
    coord_y = jnp.arange(h, dtype=jnp.float32)[None, :, None]
    gx = (coord_x + flow_x) / w * 2.0 - 1.0
    gy = (coord_y + flow_y) / h * 2.0 - 1.0

    fx = (gx + 1.0) * 0.5 * (ww - 1)
    fy = (gy + 1.0) * 0.5 * (hh - 1)
    x0 = jnp.floor(fx)
    y0 = jnp.floor(fy)
    wx1 = fx - x0
    wx0 = 1.0 - wx1
    wy1 = fy - y0
    wy0 = 1.0 - wy1
    x0c = jnp.clip(x0, 0, ww - 1).astype(jnp.int32)
    x1c = jnp.clip(x0 + 1.0, 0, ww - 1).astype(jnp.int32)
    y0c = jnp.clip(y0, 0, hh - 1).astype(jnp.int32)
    y1c = jnp.clip(y0 + 1.0, 0, hh - 1).astype(jnp.int32)

    def gather(yy, xx):
        return jax.vmap(lambda img, yi, xi: img[:, yi, xi])(image, yy, xx)

    v00, v01 = gather(y0c, x0c), gather(y0c, x1c)
    v10, v11 = gather(y1c, x0c), gather(y1c, x1c)
    w00 = (wy0 * wx0)[:, None]
    w01 = (wy0 * wx1)[:, None]
    w10 = (wy1 * wx0)[:, None]
    w11 = (wy1 * wx1)[:, None]
    return v00 * w00 + v01 * w01 + v10 * w10 + v11 * w11


def photometric_loss(frame1, frame2, flow, delta=0.001, alpha=0.45):
    warped = warp_images_with_flow(frame2, flow)
    return robust_sq_diff_sum(frame1, warped, delta2=float(delta) ** 2,
                              alpha=float(alpha))


def _resize_nearest_nchw(x, hs, ws):
    """F.interpolate(mode='nearest') equivalent for NCHW tensors."""
    n, c, h, w = x.shape
    if (h, w) == (hs, ws):
        return x
    rows = jnp.floor(jnp.arange(hs, dtype=jnp.float32) * (h / hs)).astype(jnp.int32)
    cols = jnp.floor(jnp.arange(ws, dtype=jnp.float32) * (w / ws)).astype(jnp.int32)
    return x[:, :, rows[:, None], cols[None, :]]


def deep_supervise_loss(input_frames, pred, flow_frame, outer_mask=None,
                        margin_mask=None, delta=0.001, alpha=0.45, kernel=3,
                        w_photometric=0.5, w_mse=1.0, w_smoothness=0.25):
    """DeepSupervise.forward (outer_mask=None branch).

    input_frames: (N, 2, H, W)  -- frame1 | frame2 stacked on channels
    pred:         list of (N, 2, h_i, w_i) predicted flows
    flow_frame:   (N, 2, H, W)  -- ground-truth flow
    """
    if outer_mask is not None:
        # TODO(synk): outer_mask branch (resize + multiply glue) not implemented.
        raise NotImplementedError("outer_mask branch is not implemented")

    n = input_frames.shape[0]
    total = jnp.zeros((), jnp.float32)
    for p in pred:
        hs, ws = int(p.shape[2]), int(p.shape[3])
        frames_s = _resize_nearest_nchw(input_frames, hs, ws)
        frame1, frame2 = frames_s[:, 0:1], frames_s[:, 1:2]
        gtflow_s = _resize_nearest_nchw(flow_frame, hs, ws)
        if margin_mask is not None and not isinstance(margin_mask, (int, float)):
            mm_s = _resize_nearest_nchw(jnp.asarray(margin_mask, jnp.float32), hs, ws)
        else:
            mm_s = 1.0 if margin_mask is None else margin_mask

        total = total + w_photometric * photometric_loss(frame1, frame2, p,
                                                         delta=delta, alpha=alpha)
        total = total + w_mse * robust_sq_diff_sum(p, gtflow_s, delta2=0.0, alpha=1.0)
        total = total + w_smoothness * smoothness_loss_from_flow(p, margin_mask=mm_s,
                                                                 kernel=kernel)
    return total


# ---------------------------------------------------------------------------
# Self-test
# ---------------------------------------------------------------------------

if __name__ == "__main__":
    key = jax.random.PRNGKey(0)
    k1, k2, k3, k4, k5 = jax.random.split(key, 5)
    n, h, w = 2, 16, 16

    input_frames = jax.random.normal(k1, (n, 2, h, w), jnp.float32)
    flow_gt = jax.random.normal(k2, (n, 2, h, w), jnp.float32)
    pred = [0.5 * jax.random.normal(k3, (n, 2, h, w), jnp.float32),
            0.5 * jax.random.normal(k4, (n, 2, h // 2, w // 2), jnp.float32)]

    # 1) Smoothness Pallas kernel vs lax.conv reference (scalar-mask path).
    for p in pred:
        got = jax.block_until_ready(smoothness_loss_from_flow(p))
        ref = jax.block_until_ready(_reference_smoothness(p[:, 0:1], p[:, 1:2]))
        if not jnp.allclose(got, ref, rtol=2e-4, atol=1e-2):
            raise AssertionError(f"smoothness mismatch: pallas={got} ref={ref}")

    # 2) Smoothness with a spatial margin mask (array-mask path).
    mm = jax.random.uniform(k5, (n, 1, h, w), dtype=jnp.float32)
    got = jax.block_until_ready(
        smoothness_loss(pred[0][:, 0:1], pred[0][:, 1:2], margin_mask=mm))
    ref = jax.block_until_ready(
        _reference_smoothness(pred[0][:, 0:1], pred[0][:, 1:2], margin_mask=mm))
    if not jnp.allclose(got, ref, rtol=2e-4, atol=1e-2):
        raise AssertionError(f"masked smoothness mismatch: pallas={got} ref={ref}")

    # 3) Robust power-sum Pallas kernel vs plain-jnp reference.
    a, b = input_frames[:, 0:1], input_frames[:, 1:2]
    got = jax.block_until_ready(robust_sq_diff_sum(a, b, delta2=1e-6, alpha=0.45))
    ref = jax.block_until_ready(jnp.sum(((a - b) ** 2 + 1e-6) ** 0.45))
    if not jnp.allclose(got, ref, rtol=1e-3, atol=1e-2):
        raise AssertionError(f"robust-sum mismatch: pallas={got} ref={ref}")

    # 4) Full DeepSupervise forward (photometric warp gather stays in plain JAX).
    total = jax.block_until_ready(deep_supervise_loss(input_frames, pred, flow_gt))
    if not bool(jnp.isfinite(total)):
        raise AssertionError("non-finite DeepSupervise loss")

    print("KERNEL_OK")
</pallas_src>

<mosaic_0001>
module attributes {stable_mosaic.version = 11 : i64} {
  func.func @_smoothness_kernel(%arg0: i32, %arg1: memref<4x16x16xf32, #tpu.memory_space<vmem>>, %arg2: memref<1x8x128xf32, #tpu.memory_space<vmem>>, %arg3: memref<4x18x18xf32, #tpu.memory_space<vmem>>) attributes {dimension_semantics = [#tpu.dimension_semantics<parallel>], iteration_bounds = array<i64: 1>, scalar_prefetch = 0 : i64, scratch_operands = 1 : i64, tpu.core_type = #tpu.core_type<tc>, window_params = [{transform_indices = @transform_0, window_bounds = array<i64: 4, 16, 16>}, {transform_indices = @transform_1, window_bounds = array<i64: 1, 8, 128>}]} {
    %c0 = arith.constant 0 : index
    %c0_0 = arith.constant 0 : index
    %c0_1 = arith.constant 0 : index
    %0 = vector.load %arg1[%c0, %c0_0, %c0_1] : memref<4x16x16xf32, #tpu.memory_space<vmem>>, vector<4x16x16xf32>
    %cst = arith.constant 0.000000e+00 : f32
    %1 = vector.broadcast %cst : f32 to vector<4x18x18xf32>
    %c0_2 = arith.constant 0 : index
    %c0_3 = arith.constant 0 : index
    %c0_4 = arith.constant 0 : index
    %2 = vector.load %arg3[%c0_2, %c0_3, %c0_4] : memref<4x18x18xf32, #tpu.memory_space<vmem>>, vector<4x18x18xf32>
    tpu.vector_store %arg3[%c0_2, %c0_3, %c0_4], %1 {strides = array<i32>} : memref<4x18x18xf32, #tpu.memory_space<vmem>>, vector<4x18x18xf32>,
    %c0_5 = arith.constant 0 : index
    %c1 = arith.constant 1 : index
    %c1_6 = arith.constant 1 : index
    %3 = vector.load %arg3[%c0_5, %c1, %c1_6] : memref<4x18x18xf32, #tpu.memory_space<vmem>>, vector<4x16x16xf32>
    tpu.vector_store %arg3[%c0_5, %c1, %c1_6], %0 {strides = array<i32>} : memref<4x18x18xf32, #tpu.memory_space<vmem>>, vector<4x16x16xf32>,
    %c0_7 = arith.constant 0 : index
    %c0_8 = arith.constant 0 : index
    %c0_9 = arith.constant 0 : index
    %4 = vector.load %arg3[%c0_7, %c0_8, %c0_9] : memref<4x18x18xf32, #tpu.memory_space<vmem>>, vector<4x18x16xf32>
    %c0_10 = arith.constant 0 : index
    %c0_11 = arith.constant 0 : index
    %c1_12 = arith.constant 1 : index
    %5 = vector.load %arg3[%c0_10, %c0_11, %c1_12] : memref<4x18x18xf32, #tpu.memory_space<vmem>>, vector<4x18x16xf32>
    %6 = arith.addf %4, %5 : vector<4x18x16xf32>
    %c0_13 = arith.constant 0 : index
    %c0_14 = arith.constant 0 : index
    %c2 = arith.constant 2 : index
    %7 = vector.load %arg3[%c0_13, %c0_14, %c2] : memref<4x18x18xf32, #tpu.memory_space<vmem>>, vector<4x18x16xf32>
    %8 = arith.addf %6, %7 : vector<4x18x16xf32>
    %9 = vector.extract_strided_slice %8 {offsets = [0, 0, 0], sizes = [4, 16, 16], strides = [1, 1, 1]} : vector<4x18x16xf32> to vector<4x16x16xf32>
    %10 = vector.extract_strided_slice %8 {offsets = [0, 1, 0], sizes = [4, 16, 16], strides = [1, 1, 1]} : vector<4x18x16xf32> to vector<4x16x16xf32>
    %11 = arith.addf %9, %10 : vector<4x16x16xf32>
    %12 = vector.extract_strided_slice %8 {offsets = [0, 2, 0], sizes = [4, 16, 16], strides = [1, 1, 1]} : vector<4x18x16xf32> to vector<4x16x16xf32>
    %13 = arith.addf %11, %12 : vector<4x16x16xf32>
    %cst_15 = arith.constant 9.000000e+00 : f32
    %14 = vector.broadcast %cst_15 : f32 to vector<4x16x16xf32>
    %15 = arith.mulf %14, %0 : vector<4x16x16xf32>
    %16 = arith.subf %15, %13 : vector<4x16x16xf32>
    %17 = arith.mulf %16, %16 : vector<4x16x16xf32>
    %cst_16 = arith.constant 0.000000e+00 : f32
    %18 = vector.broadcast %cst_16 : f32 to vector<1x8x128xf32>
    %19 = vector.shape_cast %17 : vector<4x16x16xf32> to vector<1x4x16x16xf32>
    %cst_17 = arith.constant dense<0.000000e+00> : vector<1xf32>
    %20 = vector.multi_reduction <add>, %19, %cst_17 [1, 2, 3] : vector<1x4x16x16xf32> to vector<1xf32>
    %21 = vector.shape_cast %20 : vector<1xf32> to vector<1x1x1x1xf32>
    %22 = vector.extract %21[0, 0, 0, 0] : f32 from vector<1x1x1x1xf32>
    %23 = vector.broadcast %22 : f32 to vector<1x8x128xf32>
    %24 = arith.addf %18, %23 : vector<1x8x128xf32>
    %c0_18 = arith.constant 0 : index
    %c0_19 = arith.constant 0 : index
    %c0_20 = arith.constant 0 : index
    %25 = vector.load %arg2[%c0_18, %c0_19, %c0_20] : memref<1x8x128xf32, #tpu.memory_space<vmem>>, vector<1x8x128xf32>
    tpu.vector_store %arg2[%c0_18, %c0_19, %c0_20], %24 {strides = array<i32>} : memref<1x8x128xf32, #tpu.memory_space<vmem>>, vector<1x8x128xf32>,
    return
  }
  func.func @transform_0(%arg0: i32) -> (i32, i32, i32) {
    %c0_i32 = arith.constant 0 : i32
    %c0_i32_0 = arith.constant 0 : i32
    %c0_i32_1 = arith.constant 0 : i32
    return %arg0, %c0_i32, %c0_i32_0 : i32, i32, i32
  }
  func.func @transform_1(%arg0: i32) -> (i32, i32, i32) {
    %c0_i32 = arith.constant 0 : i32
    %c0_i32_0 = arith.constant 0 : i32
    %c0_i32_1 = arith.constant 0 : i32
    return %arg0, %c0_i32, %c0_i32_0 : i32, i32, i32
  }
}

</mosaic_0001>

<llo_original>
// kernel: tpu_custom_call.1
$region0: #{tpu_custom_call.1}
  #allocation0 [shape = 'u32[]', space=smem, size = 0x4, offset = 0x4, fixed_abs, tag = 'smem constant byte address 0x4 - core index']
  #allocation1 [shape = 'u32[144,128]{1,0:T(1,128)}', space=vmem, size = 0x12000, scoped, tag = 'internal scratch']
  #allocation2 [shape = 'f32[4,18,18]{2,1,0:T(8,128)}', space=vmem, size = 0xc000, scoped, tag = 'scratch operand']
  %s0 = inlined_call_operand.hbm [shape: f32[4,16,16], index: 0, kind: input, shape index: {}]
  %s1 = inlined_call_operand.hbm [shape: f32[1,8,128], index: 1, kind: output, shape index: {}]
  %s2 = sld [smem:[#allocation0]]
  $region18: #{tpu_custom_call.1} parent=0
    _
  %s4 = ssub.s32 1, %s2
  %s5 = scalar_select 0, %s4, %s2
  $region1: #{tpu_custom_call.1} parent=0
    #allocation3 [shape = 'u8[32768]{0}', space=vmem, size = 0x8000, scoped, tag = 'input window, operand 0, single buffered']
    #allocation4 [shape = 's32[1]{0}', space=sflag, size = 0x4, scoped, tag = 'scoped memory for tpu_custom_call.1']
    #allocation5 [shape = 's32[1]{0}', space=sflag, size = 0x4, scoped, tag = 'scoped memory for tpu_custom_call.1']
    #allocation6 [shape = 'u8[4096]{0}', space=vmem, size = 0x1000, scoped, tag = 'output window, operand 0, single buffered']
    %6 = vsyncpa [#allocation4], 0
    %7 = vsyncpa [#allocation5], 0
    // Predicated region
    $region2: #{tpu_custom_call.1} parent=1 // pred_check
      _
    $region3: #{tpu_custom_call.1} parent=1 // pred_check_branch
      %9 = sbr.rel (0) target = $region5
    $region4: #{tpu_custom_call.1} parent=1 // pred_region
      %s11 = ssub.s32 1024, 1024
      %12 = vsyncadd [#allocation4], %s11
      %s13 = sshll.u32 [#allocation3], 4
      %s14 = int_to_ptr.vmem [resolvable:$true] %s13
      %19 = dma.hbm_to_vmem [thread:$0]  %s0, 1024, %s14, [#allocation4], 128, 128, 8
    $region5: #{tpu_custom_call.1} parent=1 // pred_fallthru
      _
    // Predicated region
    $region6: #{tpu_custom_call.1} parent=1 // pred_check
      _
    $region7: #{tpu_custom_call.1} parent=1 // pred_check_branch
      %21 = sbr.rel (0) target = $region9
    $region8: #{tpu_custom_call.1} parent=1 // pred_region
      %22 = dma.done [#allocation4], 1024
    $region9: #{tpu_custom_call.1} parent=1 // pred_fallthru
      _
    %v23 = vld [vmem:[#allocation3] sm:$0xff]
    %v24 = vld [vmem:[#allocation3 + $0x8] sm:$0xff]
    %v25 = vld [vmem:[#allocation3 + $0x10] sm:$0xff]
    %v26 = vld [vmem:[#allocation3 + $0x18] sm:$0xff]
    %v27 = vld [vmem:[#allocation3 + $0x20] sm:$0xff]
    %v28 = vld [vmem:[#allocation3 + $0x28] sm:$0xff]
    %v29 = vld [vmem:[#allocation3 + $0x30] sm:$0xff]
    %v30 = vld [vmem:[#allocation3 + $0x38] sm:$0xff]
    %vm31 = vcmask 146432
    %32 = vst.msk [vmem:[#allocation2] sm:$0xff] %vm31, 0.0
    %33 = vst.msk [vmem:[#allocation2 + $0x8] sm:$0xff] %vm31, 0.0
    %vm34 = vcmask 140288
    %35 = vst.msk [vmem:[#allocation2 + $0x10] sm:$0x3] %vm34, 0.0
    %36 = vst.msk [vmem:[#allocation2 + $0x18] sm:$0xff] %vm31, 0.0
    %37 = vst.msk [vmem:[#allocation2 + $0x20] sm:$0xff] %vm31, 0.0
    %38 = vst.msk [vmem:[#allocation2 + $0x28] sm:$0x3] %vm34, 0.0
    %39 = vst.msk [vmem:[#allocation2 + $0x30] sm:$0xff] %vm31, 0.0
    %40 = vst.msk [vmem:[#allocation2 + $0x38] sm:$0xff] %vm31, 0.0
    %41 = vst.msk [vmem:[#allocation2 + $0x40] sm:$0x3] %vm34, 0.0
    %42 = vst.msk [vmem:[#allocation2 + $0x48] sm:$0xff] %vm31, 0.0
    %43 = vst.msk [vmem:[#allocation2 + $0x50] sm:$0xff] %vm31, 0.0
    %44 = vst.msk [vmem:[#allocation2 + $0x58] sm:$0x3] %vm34, 0.0
    %53 = vrot.lane.b32.xlu0 %v23, 1
    %v54 = vpop.permute.xlu0 %53
    %55 = vrot.lane.b32.xlu0 %v24, 1
    %v56 = vpop.permute.xlu0 %55
    %57 = vrot.lane.b32.xlu0 %v25, 1
    %v58 = vpop.permute.xlu0 %57
    %59 = vrot.lane.b32.xlu0 %v26, 1
    %v60 = vpop.permute.xlu0 %59
    %61 = vrot.lane.b32.xlu0 %v27, 1
    %v62 = vpop.permute.xlu0 %61
    %63 = vrot.lane.b32.xlu0 %v28, 1
    %v64 = vpop.permute.xlu0 %63
    %65 = vrot.lane.b32.xlu0 %v29, 1
    %v66 = vpop.permute.xlu0 %65
    %67 = vrot.lane.b32.xlu0 %v30, 1
    %v68 = vpop.permute.xlu0 %67
    %vm77 = vcmask 138248
    %78 = vst.msk [vmem:[#allocation2 + $0x1] sm:$0xff] %vm77, %v54
    %79 = vst.msk [vmem:[#allocation2 + $0x9] sm:$0xff] %vm77, %v56
    %80 = vst.msk [vmem:[#allocation2 + $0x19] sm:$0xff] %vm77, %v58
    %81 = vst.msk [vmem:[#allocation2 + $0x21] sm:$0xff] %vm77, %v60
    %82 = vst.msk [vmem:[#allocation2 + $0x31] sm:$0xff] %vm77, %v62
    %83 = vst.msk [vmem:[#allocation2 + $0x39] sm:$0xff] %vm77, %v64
    %84 = vst.msk [vmem:[#allocation2 + $0x49] sm:$0xff] %vm77, %v66
    %85 = vst.msk [vmem:[#allocation2 + $0x51] sm:$0xff] %vm77, %v68
    %v86 = vld [vmem:[#allocation2] sm:$0xff]
    %v87 = vld [vmem:[#allocation2 + $0x8] sm:$0xff]
    %v88 = vld [vmem:[#allocation2 + $0x10] sm:$0x3]
    %v89 = vld [vmem:[#allocation2 + $0x18] sm:$0xff]
    %v90 = vld [vmem:[#allocation2 + $0x20] sm:$0xff]
    %v91 = vld [vmem:[#allocation2 + $0x28] sm:$0x3]
    %v92 = vld [vmem:[#allocation2 + $0x30] sm:$0xff]
    %v93 = vld [vmem:[#allocation2 + $0x38] sm:$0xff]
    %v94 = vld [vmem:[#allocation2 + $0x40] sm:$0x3]
    %v95 = vld [vmem:[#allocation2 + $0x48] sm:$0xff]
    %v96 = vld [vmem:[#allocation2 + $0x50] sm:$0xff]
    %v97 = vld [vmem:[#allocation2 + $0x58] sm:$0x3]
    %110 = vrot.lane.b32.xlu0 %v86, 127
    %v111 = vpop.permute.xlu0 %110
    %112 = vrot.lane.b32.xlu0 %v87, 127
    %v113 = vpop.permute.xlu0 %112
    %114 = vrot.lane.b32.xlu0 %v88, 127
    %v115 = vpop.permute.xlu0 %114
    %116 = vrot.lane.b32.xlu0 %v89, 127
    %v117 = vpop.permute.xlu0 %116
    %118 = vrot.lane.b32.xlu0 %v90, 127
    %v119 = vpop.permute.xlu0 %118
    %120 = vrot.lane.b32.xlu0 %v91, 127
    %v121 = vpop.permute.xlu0 %120
    %122 = vrot.lane.b32.xlu0 %v92, 127
    %v123 = vpop.permute.xlu0 %122
    %124 = vrot.lane.b32.xlu0 %v93, 127
    %v125 = vpop.permute.xlu0 %124
    %126 = vrot.lane.b32.xlu0 %v94, 127
    %v127 = vpop.permute.xlu0 %126
    %128 = vrot.lane.b32.xlu0 %v95, 127
    %v129 = vpop.permute.xlu0 %128
    %130 = vrot.lane.b32.xlu0 %v96, 127
    %v131 = vpop.permute.xlu0 %130
    %132 = vrot.lane.b32.xlu0 %v97, 127
    %v133 = vpop.permute.xlu0 %132
    %v146 = vadd.f32 %v86, %v111
    %v147 = vadd.f32 %v87, %v113
    %v148 = vadd.f32 %v88, %v115
    %v149 = vadd.f32 %v89, %v117
    %v150 = vadd.f32 %v90, %v119
    %v151 = vadd.f32 %v91, %v121
    %v152 = vadd.f32 %v92, %v123
    %v153 = vadd.f32 %v93, %v125
    %v154 = vadd.f32 %v94, %v127
    %v155 = vadd.f32 %v95, %v129
    %v156 = vadd.f32 %v96, %v131
    %v157 = vadd.f32 %v97, %v133
    %158 = vrot.lane.b32.xlu0 %v86, 126
    %v159 = vpop.permute.xlu0 %158
    %160 = vrot.lane.b32.xlu0 %v87, 126
    %v161 = vpop.permute.xlu0 %160
    %162 = vrot.lane.b32.xlu0 %v88, 126
    %v163 = vpop.permute.xlu0 %162
    %164 = vrot.lane.b32.xlu0 %v89, 126
    %v165 = vpop.permute.xlu0 %164
    %166 = vrot.lane.b32.xlu0 %v90, 126
    %v167 = vpop.permute.xlu0 %166
    %168 = vrot.lane.b32.xlu0 %v91, 126
    %v169 = vpop.permute.xlu0 %168
    %170 = vrot.lane.b32.xlu0 %v92, 126
    %v171 = vpop.permute.xlu0 %170
    %172 = vrot.lane.b32.xlu0 %v93, 126
    %v173 = vpop.permute.xlu0 %172
    %174 = vrot.lane.b32.xlu0 %v94, 126
    %v175 = vpop.permute.xlu0 %174
    %176 = vrot.lane.b32.xlu0 %v95, 126
    %v177 = vpop.permute.xlu0 %176
    %178 = vrot.lane.b32.xlu0 %v96, 126
    %v179 = vpop.permute.xlu0 %178
    %180 = vrot.lane.b32.xlu0 %v97, 126
    %v181 = vpop.permute.xlu0 %180
    %v194 = vadd.f32 %v146, %v159
    %v195 = vadd.f32 %v147, %v161
    %v196 = vadd.f32 %v148, %v163
    %v197 = vadd.f32 %v149, %v165
    %v198 = vadd.f32 %v150, %v167
    %v199 = vadd.f32 %v151, %v169
    %v200 = vadd.f32 %v152, %v171
    %v201 = vadd.f32 %v153, %v173
    %v202 = vadd.f32 %v154, %v175
    %v203 = vadd.f32 %v155, %v177
    %v204 = vadd.f32 %v156, %v179
    %v205 = vadd.f32 %v157, %v181
    %vm218 = vcmask 1046528
    %v219 = vrot.slane %v194, 1
    %v220 = vrot.slane %v195, 1
    %v221 = vsel %vm218, %v219, %v220
    %v222 = vrot.slane %v196, 1
    %v223 = vsel %vm218, %v220, %v222
    %v224 = vrot.slane %v197, 1
    %v225 = vrot.slane %v198, 1
    %v226 = vsel %vm218, %v224, %v225
    %v227 = vrot.slane %v199, 1
    %v228 = vsel %vm218, %v225, %v227
    %v229 = vrot.slane %v200, 1
    %v230 = vrot.slane %v201, 1
    %v231 = vsel %vm218, %v229, %v230
    %v232 = vrot.slane %v202, 1
    %v233 = vsel %vm218, %v230, %v232
    %v234 = vrot.slane %v203, 1
    %v235 = vrot.slane %v204, 1
    %v236 = vsel %vm218, %v234, %v235
    %v237 = vrot.slane %v205, 1
    %v238 = vsel %vm218, %v235, %v237
    %v247 = vadd.f32 %v194, %v221
    %v248 = vadd.f32 %v195, %v223
    %v249 = vadd.f32 %v197, %v226
    %v250 = vadd.f32 %v198, %v228
    %v251 = vadd.f32 %v200, %v231
    %v252 = vadd.f32 %v201, %v233
    %v253 = vadd.f32 %v203, %v236
    %v254 = vadd.f32 %v204, %v238
    %vm255 = vcmask 1045504
    %v256 = vrot.slane %v194, 2
    %v257 = vrot.slane %v195, 2
    %v258 = vsel %vm255, %v256, %v257
    %v259 = vrot.slane %v196, 2
    %v260 = vsel %vm255, %v257, %v259
    %v261 = vrot.slane %v197, 2
    %v262 = vrot.slane %v198, 2
    %v263 = vsel %vm255, %v261, %v262
    %v264 = vrot.slane %v199, 2
    %v265 = vsel %vm255, %v262, %v264
    %v266 = vrot.slane %v200, 2
    %v267 = vrot.slane %v201, 2
    %v268 = vsel %vm255, %v266, %v267
    %v269 = vrot.slane %v202, 2
    %v270 = vsel %vm255, %v267, %v269
    %v271 = vrot.slane %v203, 2
    %v272 = vrot.slane %v204, 2
    %v273 = vsel %vm255, %v271, %v272
    %v274 = vrot.slane %v205, 2
    %v275 = vsel %vm255, %v272, %v274
    %v284 = vadd.f32 %v247, %v258
    %v285 = vadd.f32 %v248, %v260
    %v286 = vadd.f32 %v249, %v263
    %v287 = vadd.f32 %v250, %v265
    %v288 = vadd.f32 %v251, %v268
    %v289 = vadd.f32 %v252, %v270
    %v290 = vadd.f32 %v253, %v273
    %v291 = vadd.f32 %v254, %v275
    %v292 = vmul.f32 %v23, 9.0
    %v293 = vmul.f32 %v24, 9.0
    %v294 = vmul.f32 %v25, 9.0
    %v295 = vmul.f32 %v26, 9.0
    %v296 = vmul.f32 %v27, 9.0
    %v297 = vmul.f32 %v28, 9.0
    %v298 = vmul.f32 %v29, 9.0
    %v299 = vmul.f32 %v30, 9.0
    %v300 = vsub.f32 %v292, %v284
    %v301 = vsub.f32 %v293, %v285
    %v302 = vsub.f32 %v294, %v286
    %v303 = vsub.f32 %v295, %v287
    %v304 = vsub.f32 %v296, %v288
    %v305 = vsub.f32 %v297, %v289
    %v306 = vsub.f32 %v298, %v290
    %v307 = vsub.f32 %v299, %v291
    %v308 = vmul.f32 %v300, %v300
    %v309 = vmul.f32 %v301, %v301
    %v310 = vmul.f32 %v302, %v302
    %v311 = vmul.f32 %v303, %v303
    %v312 = vmul.f32 %v304, %v304
    %v313 = vmul.f32 %v305, %v305
    %v314 = vmul.f32 %v306, %v306
    %v315 = vmul.f32 %v307, %v307
    %vm316 = vcmask 130048
    %v317 = vsel %vm316, %v308, 0.0
    %v318 = vsel %vm316, %v309, 0.0
    %v319 = vadd.f32 %v317, %v318
    %v320 = vsel %vm316, %v310, 0.0
    %v321 = vadd.f32 %v319, %v320
    %v322 = vsel %vm316, %v311, 0.0
    %v323 = vadd.f32 %v321, %v322
    %v324 = vsel %vm316, %v312, 0.0
    %v325 = vadd.f32 %v323, %v324
    %v326 = vsel %vm316, %v313, 0.0
    %v327 = vadd.f32 %v325, %v326
    %v328 = vsel %vm316, %v314, 0.0
    %v329 = vadd.f32 %v327, %v328
    %v330 = vsel %vm316, %v315, 0.0
    %v331 = vadd.f32 %v329, %v330
    %332 = vadd.xlane.f32.xlu0 %v331
    %v333 = vpop.xlane.xlu0 %332
    %v334 = vrot.slane %v333, 4
    %v335 = vadd.f32 %v333, %v334
    %v336 = vrot.slane %v335, 2
    %v337 = vadd.f32 %v335, %v336
    %v338 = vrot.slane %v337, 1
    %v339 = vadd.f32 %v337, %v338
    %s340 = vtos %v339
    %v341 = vstv %s340
    %v342 = vadd.f32 %v341, 0.0
    %343 = vst [vmem:[#allocation6] sm:$0xff] %v342
    // Predicated region
    $region10: #{tpu_custom_call.1} parent=1 // pred_check
      _
    $region11: #{tpu_custom_call.1} parent=1 // pred_check_branch
      %345 = sbr.rel (0) target = $region13
    $region12: #{tpu_custom_call.1} parent=1 // pred_region
      %s347 = ssub.s32 128, 128
      %348 = vsyncadd [#allocation5], %s347
      %s350 = sshll.u32 [#allocation6], 4
      %s351 = int_to_ptr.vmem [resolvable:$true] %s350
      %353 = dma.vmem_to_hbm [thread:$0]  %s351, 128, %s1, [#allocation5]
    $region13: #{tpu_custom_call.1} parent=1 // pred_fallthru
      _
    // Predicated region
    $region14: #{tpu_custom_call.1} parent=1 // pred_check
      _
    $region15: #{tpu_custom_call.1} parent=1 // pred_check_branch
      %355 = sbr.rel (0) target = $region17
    $region16: #{tpu_custom_call.1} parent=1 // pred_region
      %356 = dma.done [#allocation5], 128
    $region17: #{tpu_custom_call.1} parent=1 // pred_fallthru
      _
    %357 = vsyncpa [#allocation4], 1
    %358 = vsyncpa [#allocation5], 1

</llo_original>
